<compile_context>
chip_gen: v7x
topology: tpu7x:2x2x1
jax: 0.10.0
libtpu: 0.0.40
codegen_flags: <defaults>
</compile_context>

<pallas_src>
import functools

import jax
import jax.numpy as jnp
from jax import lax
from jax.experimental import pallas as pl
from jax.experimental.pallas import tpu as pltpu

LANES = 128
ROW_ALIGN = 32            # block 2nd-minor granule valid for f32/bf16/int8 tiles
ACC_ROWS = 32             # per-split partial accumulator (4 f32 vregs)
SENTINEL_LOGIT = -100.0   # loss(-100, 0) = log1p(exp(-100)) ~ 4e-44 -> ~0
DEFAULT_BLOCK_BYTES = 4 * 1024 * 1024   # target DMA bytes per input per block
MAX_TILE_ROWS = 8192                    # caps f32 intermediates at 4 MiB each


def _cdiv(a, b):
    return -(-a // b)


def _round_up(a, b):
    return _cdiv(a, b) * b


def _default_num_core_splits():
    # v7x has 2 TensorCores per chip; v5e/v6e have 1.
    try:
        kind = jax.devices()[0].device_kind.lower()
    except Exception:
        return 1
    return 2 if "v7" in kind else 1


def _bce_kernel(pw_ref, pred_ref, targ_ref, out_ref, *,
                steps, tile_rows, valid_rows, apply_mask):
    s = pl.program_id(0)   # core split ("parallel")
    i = pl.program_id(1)   # streaming step ("arbitrary", reduction axis last)

    @pl.when(i == 0)
    def _():
        out_ref[...] = jnp.zeros_like(out_ref)

    x = pred_ref[...].astype(jnp.float32)
    t = targ_ref[...].astype(jnp.float32)

    # Numerically stable BCE-with-logits; pos_weight factored so pw==1 is ~free.
    #   L    = log1p(exp(-|x|))                 (EUP: exp + log1p, separate slot)
    #   base = max(x,0) - t*x + L               (pos_weight == 1 loss)
    #   loss = base + (pw-1) * t * (L + max(-x,0))
    log1p_term = jnp.log1p(jnp.exp(-jnp.abs(x)))
    base = jnp.maximum(x, 0.0) - t * x + log1p_term
    pw_m1 = pw_ref[0] - 1.0
    loss = base + pw_m1 * (t * (log1p_term + jnp.maximum(-x, 0.0)))

    if apply_mask:
        # Zero rows past the real data (partial edge block / clamped repeat block).
        row0 = (s * steps + i) * tile_rows
        rows = row0 + lax.broadcasted_iota(jnp.int32, (tile_rows, 1), 0)
        loss = jnp.where(rows < valid_rows, loss, 0.0)

    # Fold (tile_rows,128) -> (ACC_ROWS,128): multiple independent add chains.
    # The expensive cross-lane reduce happens once, on the tiny output, in JAX.
    out_ref[...] += jnp.sum(
        loss.reshape(tile_rows // ACC_ROWS, ACC_ROWS, LANES), axis=0)


def bce_with_logits_loss(predictions, targets, pos_weight=1.0, *,
                         reduction="mean",
                         block_bytes=DEFAULT_BLOCK_BYTES,
                         num_core_splits=None):
    """BCEWithLogitsLoss (scalar pos_weight) as a streaming Pallas TPU kernel."""
    assert predictions.shape == targets.shape
    total = int(predictions.size)
    assert total > 0
    if reduction not in ("mean", "sum"):
        # TODO(synk): reduction='none' needs an elementwise-output kernel variant.
        raise NotImplementedError("only reduction='mean'/'sum' are implemented")

    if targets.dtype == jnp.bool_:
        targets = targets.astype(jnp.int8)

    flat_p = predictions.reshape(-1)   # free reshape (row-major)
    flat_t = targets.reshape(-1)

    # ---- tiling --------------------------------------------------------------
    rows = _cdiv(total, LANES)
    itemsize = max(flat_p.dtype.itemsize, flat_t.dtype.itemsize)
    tile_rows = max(ROW_ALIGN, min(MAX_TILE_ROWS, block_bytes // (LANES * itemsize)))
    tile_rows = _round_up(tile_rows, ROW_ALIGN)
    if rows <= tile_rows:
        # Single-block regime: block exactly covers the (padded) data.
        tile_rows = _round_up(rows, ROW_ALIGN)
        padded_rows = tile_rows
    else:
        # Streaming regime: no row padding; last partial block is masked in-kernel.
        padded_rows = rows

    # ---- padding (at most <128 elems in the streaming regime) -----------------
    pad = padded_rows * LANES - total
    if pad:
        flat_p = jnp.pad(flat_p, (0, pad), constant_values=SENTINEL_LOGIT)
        flat_t = jnp.pad(flat_t, (0, pad), constant_values=0)
    pred2d = flat_p.reshape(padded_rows, LANES)
    targ2d = flat_t.reshape(padded_rows, LANES)

    # ---- grid ------------------------------------------------------------------
    blocks_total = _cdiv(padded_rows, tile_rows)
    if num_core_splits is None:
        num_core_splits = _default_num_core_splits()
    num_splits = max(1, min(int(num_core_splits), blocks_total))
    steps = _cdiv(blocks_total, num_splits)
    covered_blocks = num_splits * steps
    needs_clamp = covered_blocks > blocks_total            # keep every DMA in-bounds
    apply_mask = (covered_blocks * tile_rows) > padded_rows

    if needs_clamp:
        in_map = lambda s, i: (jnp.minimum(s * steps + i, blocks_total - 1), 0)
    else:
        in_map = lambda s, i: (s * steps + i, 0)

    kernel = functools.partial(_bce_kernel, steps=steps, tile_rows=tile_rows,
                               valid_rows=padded_rows, apply_mask=apply_mask)

    pw_arr = jnp.full((1,), pos_weight, dtype=jnp.float32)

    partials = pl.pallas_call(
        kernel,
        out_shape=jax.ShapeDtypeStruct((num_splits * ACC_ROWS, LANES), jnp.float32),
        grid_spec=pltpu.PrefetchScalarGridSpec(
            num_scalar_prefetch=0,
            grid=(num_splits, steps),
            in_specs=[
                pl.BlockSpec(memory_space=pltpu.MemorySpace.SMEM),  # pos_weight scalar
                pl.BlockSpec((tile_rows, LANES), in_map),
                pl.BlockSpec((tile_rows, LANES), in_map),
            ],
            out_specs=pl.BlockSpec((ACC_ROWS, LANES), lambda s, i: (s, 0)),
        ),
        compiler_params=pltpu.CompilerParams(
            dimension_semantics=("parallel", "arbitrary"),
            vmem_limit_bytes=48 * 1024 * 1024,
        ),
    )(pw_arr, pred2d, targ2d)

    loss_sum = jnp.sum(partials)
    if reduction == "sum":
        return loss_sum
    return loss_sum / total   # 'mean': divide by the *real* element count


def _reference(predictions, targets, pos_weight=1.0):
    x = predictions.astype(jnp.float32)
    t = targets.astype(jnp.float32)
    log1p_term = jnp.log1p(jnp.exp(-jnp.abs(x)))
    log_sig_pos = jnp.minimum(x, 0.0) - log1p_term
    log_sig_neg = jnp.minimum(-x, 0.0) - log1p_term
    loss = -(pos_weight * t * log_sig_pos + (1.0 - t) * log_sig_neg)
    return jnp.mean(loss)


if __name__ == "__main__":
    key = jax.random.PRNGKey(0)
    k1, k2, k3, k4, k5, k6 = jax.random.split(key, 6)

    # NCHW-style logits/targets: batch=2, channels=4, spatial=16x16.
    shape = (2, 4, 16, 16)
    preds = jax.random.normal(k1, shape, dtype=jnp.float32)
    targs = jax.random.bernoulli(k2, 0.5, shape).astype(jnp.float32)

    # Module defaults: reduction='mean', pos_weight=1.0.
    out = jax.block_until_ready(bce_with_logits_loss(preds, targs))
    ref = _reference(preds, targs, 1.0)
    assert jnp.allclose(out, ref, rtol=1e-5, atol=1e-6), (out, ref)

    # General pos_weight (same compiled kernel: pos_weight lives in SMEM).
    out2 = jax.block_until_ready(bce_with_logits_loss(preds, targs, pos_weight=2.0))
    ref2 = _reference(preds, targs, 2.0)
    assert jnp.allclose(out2, ref2, rtol=1e-5, atol=1e-6), (out2, ref2)

    # Narrow-dtype streaming path: bf16 logits + int8 {0,1} targets.
    out3 = jax.block_until_ready(
        bce_with_logits_loss(preds.astype(jnp.bfloat16), targs.astype(jnp.int8),
                             pos_weight=1.5))
    ref3 = _reference(preds.astype(jnp.bfloat16).astype(jnp.float32), targs, 1.5)
    assert jnp.allclose(out3, ref3, rtol=1e-4, atol=1e-6), (out3, ref3)

    # Ragged shape -> tiny sentinel pad, single block.
    shape4 = (2, 3, 5, 7)
    p4 = jax.random.normal(k3, shape4, dtype=jnp.float32)
    t4 = jax.random.bernoulli(k4, 0.5, shape4).astype(jnp.float32)
    out4 = jax.block_until_ready(bce_with_logits_loss(p4, t4, pos_weight=1.5))
    ref4 = _reference(p4, t4, 1.5)
    assert jnp.allclose(out4, ref4, rtol=1e-5, atol=1e-6), (out4, ref4)

    # Streaming regime at small size: multi-step grid, partial edge block,
    # in-kernel row mask (force tiny 32-row blocks).
    shape5 = (5, 3, 24, 16)   # 5760 elems -> 45 rows -> 2 steps of 32 rows
    p5 = jax.random.normal(k5, shape5, dtype=jnp.float32)
    t5 = jax.random.bernoulli(k6, 0.5, shape5).astype(jnp.float32)
    out5 = jax.block_until_ready(
        bce_with_logits_loss(p5, t5, pos_weight=0.5,
                             block_bytes=ROW_ALIGN * LANES * 4))
    ref5 = _reference(p5, t5, 0.5)
    assert jnp.allclose(out5, ref5, rtol=1e-5, atol=1e-6), (out5, ref5)

    # Two-way core split with block-index clamping (v7x megacore layout; runs
    # as a serial loop on single-core chips).
    shape6 = (2, 5, 7, 128)   # 8960 elems -> 70 rows -> 3 blocks over 2 splits
    p6 = jax.random.normal(k1, shape6, dtype=jnp.float32)
    t6 = jax.random.bernoulli(k2, 0.5, shape6).astype(jnp.float32)
    out6 = jax.block_until_ready(
        bce_with_logits_loss(p6, t6, pos_weight=3.0, num_core_splits=2,
                             block_bytes=ROW_ALIGN * LANES * 4))
    ref6 = _reference(p6, t6, 3.0)
    assert jnp.allclose(out6, ref6, rtol=1e-5, atol=1e-6), (out6, ref6)

    print("KERNEL_OK")
</pallas_src>

<mosaic_0001>
module attributes {stable_mosaic.version = 11 : i64} {
  func.func @_bce_kernel(%arg0: i32, %arg1: i32, %arg2: memref<1xf32, #tpu.memory_space<smem>>, %arg3: memref<32x128xf32, #tpu.memory_space<vmem>>, %arg4: memref<32x128xf32, #tpu.memory_space<vmem>>, %arg5: memref<32x128xf32, #tpu.memory_space<vmem>>) attributes {dimension_semantics = [#tpu.dimension_semantics<parallel>, #tpu.dimension_semantics<arbitrary>], iteration_bounds = array<i64: 1, 1>, scalar_prefetch = 0 : i64, scratch_operands = 0 : i64, tpu.core_type = #tpu.core_type<tc>, window_params = [{transform_indices = @transform_0, window_bounds = array<i64: 1>}, {transform_indices = @transform_1, window_bounds = array<i64: 32, 128>}, {transform_indices = @transform_2, window_bounds = array<i64: 32, 128>}, {transform_indices = @transform_3, window_bounds = array<i64: 32, 128>}]} {
    %c0_i32 = arith.constant 0 : i32
    %0 = arith.cmpi eq, %arg1, %c0_i32 : i32
    %1 = arith.extui %0 : i1 to i32
    %c0_i32_0 = arith.constant 0 : i32
    %2 = arith.cmpi ne, %1, %c0_i32_0 : i32
    scf.if %2 {
      %cst_14 = arith.constant 0.000000e+00 : f32
      %31 = vector.broadcast %cst_14 : f32 to vector<32x128xf32>
      %c0_15 = arith.constant 0 : index
      %c0_16 = arith.constant 0 : index
      %32 = vector.load %arg5[%c0_15, %c0_16] : memref<32x128xf32, #tpu.memory_space<vmem>>, vector<32x128xf32>
      tpu.vector_store %arg5[%c0_15, %c0_16], %31 {strides = array<i32>} : memref<32x128xf32, #tpu.memory_space<vmem>>, vector<32x128xf32>,
    } else {
    }
    %c0 = arith.constant 0 : index
    %c0_1 = arith.constant 0 : index
    %3 = vector.load %arg3[%c0, %c0_1] : memref<32x128xf32, #tpu.memory_space<vmem>>, vector<32x128xf32>
    %c0_2 = arith.constant 0 : index
    %c0_3 = arith.constant 0 : index
    %4 = vector.load %arg4[%c0_2, %c0_3] : memref<32x128xf32, #tpu.memory_space<vmem>>, vector<32x128xf32>
    %5 = math.absf %3 : vector<32x128xf32>
    %cst = arith.constant 0.000000e+00 : f32
    %6 = vector.broadcast %cst : f32 to vector<32x128xf32>
    %7 = arith.subf %6, %5 : vector<32x128xf32>
    %8 = math.exp %7 : vector<32x128xf32>
    %9 = math.log1p %8 : vector<32x128xf32>
    %cst_4 = arith.constant 0.000000e+00 : f32
    %10 = vector.broadcast %cst_4 : f32 to vector<32x128xf32>
    %11 = arith.maximumf %3, %10 : vector<32x128xf32>
    %12 = arith.mulf %4, %3 : vector<32x128xf32>
    %13 = arith.subf %11, %12 : vector<32x128xf32>
    %14 = arith.addf %13, %9 : vector<32x128xf32>
    %c0_5 = arith.constant 0 : index
    %15 = memref.load %arg2[%c0_5] : memref<1xf32, #tpu.memory_space<smem>>
    %cst_6 = arith.constant 1.000000e+00 : f32
    %16 = arith.subf %15, %cst_6 : f32
    %cst_7 = arith.constant 0.000000e+00 : f32
    %17 = vector.broadcast %cst_7 : f32 to vector<32x128xf32>
    %18 = arith.subf %17, %3 : vector<32x128xf32>
    %cst_8 = arith.constant 0.000000e+00 : f32
    %19 = vector.broadcast %cst_8 : f32 to vector<32x128xf32>
    %20 = arith.maximumf %18, %19 : vector<32x128xf32>
    %21 = arith.addf %9, %20 : vector<32x128xf32>
    %22 = arith.mulf %4, %21 : vector<32x128xf32>
    %23 = vector.broadcast %16 : f32 to vector<32x128xf32>
    %24 = arith.mulf %23, %22 : vector<32x128xf32>
    %25 = arith.addf %14, %24 : vector<32x128xf32>
    %c0_9 = arith.constant 0 : index
    %c0_10 = arith.constant 0 : index
    %26 = vector.load %arg5[%c0_9, %c0_10] : memref<32x128xf32, #tpu.memory_space<vmem>>, vector<32x128xf32>
    %27 = vector.shape_cast %25 : vector<32x128xf32> to vector<1x32x128xf32>
    %cst_11 = arith.constant dense<0.000000e+00> : vector<32x128xf32>
    %28 = vector.multi_reduction <add>, %27, %cst_11 [0] : vector<1x32x128xf32> to vector<32x128xf32>
    %29 = arith.addf %26, %28 : vector<32x128xf32>
    %c0_12 = arith.constant 0 : index
    %c0_13 = arith.constant 0 : index
    %30 = vector.load %arg5[%c0_12, %c0_13] : memref<32x128xf32, #tpu.memory_space<vmem>>, vector<32x128xf32>
    tpu.vector_store %arg5[%c0_12, %c0_13], %29 {strides = array<i32>} : memref<32x128xf32, #tpu.memory_space<vmem>>, vector<32x128xf32>,
    return
  }
  func.func @transform_0(%arg0: i32, %arg1: i32) -> i32 {
    %c0_i32 = arith.constant 0 : i32
    %c0_i32_0 = arith.constant 0 : i32
    return %c0_i32 : i32
  }
  func.func @transform_1(%arg0: i32, %arg1: i32) -> (i32, i32) {
    %c1_i32 = arith.constant 1 : i32
    %0 = arith.muli %arg0, %c1_i32 : i32
    %1 = arith.addi %0, %arg1 : i32
    %c0_i32 = arith.constant 0 : i32
    %c0_i32_0 = arith.constant 0 : i32
    return %1, %c0_i32 : i32, i32
  }
  func.func @transform_2(%arg0: i32, %arg1: i32) -> (i32, i32) {
    %c1_i32 = arith.constant 1 : i32
    %0 = arith.muli %arg0, %c1_i32 : i32
    %1 = arith.addi %0, %arg1 : i32
    %c0_i32 = arith.constant 0 : i32
    %c0_i32_0 = arith.constant 0 : i32
    return %1, %c0_i32 : i32, i32
  }
  func.func @transform_3(%arg0: i32, %arg1: i32) -> (i32, i32) {
    %c0_i32 = arith.constant 0 : i32
    %c0_i32_0 = arith.constant 0 : i32
    return %arg0, %c0_i32 : i32, i32
  }
}

</mosaic_0001>

<llo_original>
// kernel: tpu_custom_call.1
$region0: #{tpu_custom_call.1}
  #allocation0 [shape = 'u32[]', space=smem, size = 0x4, offset = 0x4, fixed_abs, tag = 'smem constant byte address 0x4 - core index']
  #allocation1 [shape = 'u32[144,128]{1,0:T(1,128)}', space=vmem, size = 0x12000, scoped, tag = 'internal scratch']
  #allocation2 [shape = 'f32[1]{0:T(128)S(6)}', space=smem, size = 0x200, scoped, tag = 'scoped memory for tpu_custom_call.1']
  %s0 = inlined_call_operand.<no memory space> [shape: f32[1], index: 0, kind: input, shape index: {}]
  %s1 = inlined_call_operand.hbm [shape: f32[32,128], index: 1, kind: input, shape index: {}]
  %s2 = inlined_call_operand.hbm [shape: f32[32,128], index: 2, kind: input, shape index: {}]
  %s3 = inlined_call_operand.hbm [shape: f32[32,128], index: 3, kind: output, shape index: {}]
  %s4 = sld [smem:[#allocation0]]
  $region34: #{tpu_custom_call.1} parent=0
    _
  %s6 = ssub.s32 1, %s4
  %s7 = scalar_select 0, %s6, %s4
  %8 = sst [smem:[#allocation2]] %s0
  $region1: #{tpu_custom_call.1} parent=0
    #allocation3 [shape = 'u8[16384]{0}', space=vmem, size = 0x4000, scoped, tag = 'input window, operand 1, single buffered']
    #allocation4 [shape = 's32[1]{0}', space=sflag, size = 0x4, scoped, tag = 'scoped memory for tpu_custom_call.1']
    #allocation5 [shape = 's32[1]{0}', space=sflag, size = 0x4, scoped, tag = 'scoped memory for tpu_custom_call.1']
    #allocation6 [shape = 'u8[16384]{0}', space=vmem, size = 0x4000, scoped, tag = 'input window, operand 2, single buffered']
    #allocation7 [shape = 's32[1]{0}', space=sflag, size = 0x4, scoped, tag = 'scoped memory for tpu_custom_call.1']
    #allocation8 [shape = 'u8[16384]{0}', space=vmem, size = 0x4000, scoped, tag = 'output window, operand 0, single buffered']
    %9 = vsyncpa [#allocation4], 0
    %10 = vsyncpa [#allocation7], 0
    %11 = vsyncpa [#allocation5], 0
    // Predicated region
    $region2: #{tpu_custom_call.1} parent=1 // pred_check
      _
    $region3: #{tpu_custom_call.1} parent=1 // pred_check_branch
      %13 = sbr.rel (0) target = $region5
    $region4: #{tpu_custom_call.1} parent=1 // pred_region
      _
    $region5: #{tpu_custom_call.1} parent=1 // pred_fallthru
      _
    // Predicated region
    $region6: #{tpu_custom_call.1} parent=1 // pred_check
      _
    $region7: #{tpu_custom_call.1} parent=1 // pred_check_branch
      %15 = sbr.rel (0) target = $region9
    $region8: #{tpu_custom_call.1} parent=1 // pred_region
      %s16 = sadd.s32 0, 0
      %s17 = smul.u32 4, %s16
      %s19 = ssub.s32 512, 512
      %20 = vsyncadd [#allocation4], %s19
      %s21 = smul.addr %s17, 128
      %s22 = scalar_lea.hbm %s1, %s21
      %s23 = sshll.u32 [#allocation3], 4
      %s24 = int_to_ptr.vmem [resolvable:$true] %s23
      %29 = dma.hbm_to_vmem [thread:$0]  %s22, 512, %s24, [#allocation4], 128, 128, 8
    $region9: #{tpu_custom_call.1} parent=1 // pred_fallthru
      _
    // Predicated region
    $region10: #{tpu_custom_call.1} parent=1 // pred_check
      _
    $region11: #{tpu_custom_call.1} parent=1 // pred_check_branch
      %31 = sbr.rel (0) target = $region13
    $region12: #{tpu_custom_call.1} parent=1 // pred_region
      %s32 = sadd.s32 0, 0
      %s33 = smul.u32 4, %s32
      %s35 = ssub.s32 512, 512
      %36 = vsyncadd [#allocation7], %s35
      %s37 = smul.addr %s33, 128
      %s38 = scalar_lea.hbm %s2, %s37
      %s39 = sshll.u32 [#allocation6], 4
      %s40 = int_to_ptr.vmem [resolvable:$true] %s39
      %45 = dma.hbm_to_vmem [thread:$0]  %s38, 512, %s40, [#allocation7], 128, 128, 8
    $region13: #{tpu_custom_call.1} parent=1 // pred_fallthru
      _
    // Predicated region
    $region14: #{tpu_custom_call.1} parent=1 // pred_check
      _
    $region15: #{tpu_custom_call.1} parent=1 // pred_check_branch
      %47 = sbr.rel (0) target = $region17
    $region16: #{tpu_custom_call.1} parent=1 // pred_region
      %48 = dma.done [#allocation4], 512
    $region17: #{tpu_custom_call.1} parent=1 // pred_fallthru
      _
    // Predicated region
    $region18: #{tpu_custom_call.1} parent=1 // pred_check
      _
    $region19: #{tpu_custom_call.1} parent=1 // pred_check_branch
      %50 = sbr.rel (0) target = $region21
    $region20: #{tpu_custom_call.1} parent=1 // pred_region
      %51 = dma.done [#allocation7], 512
    $region21: #{tpu_custom_call.1} parent=1 // pred_fallthru
      _
    %s52 = sadd.s32 0, 0
    %s53 = smul.u32 4, %s52
    %s54 = sadd.s32 0, 0
    %s55 = smul.u32 4, %s54
    %p56 = scmp.eq.s32.totalorder 0, 0
    // Predicated region
    $region22: #{tpu_custom_call.1} parent=1 // pred_check
      %p57 = pneg %p56
    $region23: #{tpu_custom_call.1} parent=1 // pred_check_branch
      %59 = sbr.rel (%p57) target = $region25
    $region24: #{tpu_custom_call.1} parent=1 // pred_region
      %60 = vst [vmem:[#allocation8] sm:$0xff] 0.0
      %61 = vst [vmem:[#allocation8 + $0x8] sm:$0xff] 0.0
      %62 = vst [vmem:[#allocation8 + $0x10] sm:$0xff] 0.0
      %63 = vst [vmem:[#allocation8 + $0x18] sm:$0xff] 0.0
    $region25: #{tpu_custom_call.1} parent=1 // pred_fallthru
      _
    %v64 = vld [vmem:[#allocation3] sm:$0xff]
    %v65 = vld [vmem:[#allocation3 + $0x8] sm:$0xff]
    %v66 = vld [vmem:[#allocation3 + $0x10] sm:$0xff]
    %v67 = vld [vmem:[#allocation3 + $0x18] sm:$0xff]
    %v68 = vld [vmem:[#allocation6] sm:$0xff]
    %v69 = vld [vmem:[#allocation6 + $0x8] sm:$0xff]
    %v70 = vld [vmem:[#allocation6 + $0x10] sm:$0xff]
    %v71 = vld [vmem:[#allocation6 + $0x18] sm:$0xff]
    %v72 = vand.u32 2147483647, %v64
    %v73 = vand.u32 2147483647, %v65
    %v74 = vand.u32 2147483647, %v66
    %v75 = vand.u32 2147483647, %v67
    %v76 = vsub.f32 0.0, %v72
    %v77 = vsub.f32 0.0, %v73
    %v78 = vsub.f32 0.0, %v74
    %v79 = vsub.f32 0.0, %v75
    %v80 = vmul.f32 %v76, 1.442695
    %v81 = vpow.pop %v80
    %v82 = vmul.f32 %v77, 1.442695
    %v83 = vpow.pop %v82
    %v84 = vmul.f32 %v78, 1.442695
    %v85 = vpow.pop %v84
    %v86 = vmul.f32 %v79, 1.442695
    %v87 = vpow.pop %v86
    %v88 = vadd.f32 %v81, 1.0
    %v89 = vlog2.pop %v88
    %v90 = vmul.f32 %v89, 0.6931472
    %v91 = vmul.f32 -0.5, %v81
    %v92 = vadd.f32 %v91, 1.0
    %v93 = vmul.f32 %v92, %v81
    %v94 = vand.u32 2147483647, %v81
    %vm95 = vcmp.lt.f32.partialorder %v94, 0.0004427343
    %v96 = vsel %vm95, %v93, %v90
    %v97 = vadd.f32 %v83, 1.0
    %v98 = vlog2.pop %v97
    %v99 = vmul.f32 %v98, 0.6931472
    %v100 = vmul.f32 -0.5, %v83
    %v101 = vadd.f32 %v100, 1.0
    %v102 = vmul.f32 %v101, %v83
    %v103 = vand.u32 2147483647, %v83
    %vm104 = vcmp.lt.f32.partialorder %v103, 0.0004427343
    %v105 = vsel %vm104, %v102, %v99
    %v106 = vadd.f32 %v85, 1.0
    %v107 = vlog2.pop %v106
    %v108 = vmul.f32 %v107, 0.6931472
    %v109 = vmul.f32 -0.5, %v85
    %v110 = vadd.f32 %v109, 1.0
    %v111 = vmul.f32 %v110, %v85
    %v112 = vand.u32 2147483647, %v85
    %vm113 = vcmp.lt.f32.partialorder %v112, 0.0004427343
    %v114 = vsel %vm113, %v111, %v108
    %v115 = vadd.f32 %v87, 1.0
    %v116 = vlog2.pop %v115
    %v117 = vmul.f32 %v116, 0.6931472
    %v118 = vmul.f32 -0.5, %v87
    %v119 = vadd.f32 %v118, 1.0
    %v120 = vmul.f32 %v119, %v87
    %v121 = vand.u32 2147483647, %v87
    %vm122 = vcmp.lt.f32.partialorder %v121, 0.0004427343
    %v123 = vsel %vm122, %v120, %v117
    %v124 = vmax.f32 %v64, 0.0
    %v125 = vmax.f32 %v65, 0.0
    %v126 = vmax.f32 %v66, 0.0
    %v127 = vmax.f32 %v67, 0.0
    %v128 = vmul.f32 %v68, %v64
    %v129 = vmul.f32 %v69, %v65
    %v130 = vmul.f32 %v70, %v66
    %v131 = vmul.f32 %v71, %v67
    %v132 = vsub.f32 %v124, %v128
    %v133 = vsub.f32 %v125, %v129
    %v134 = vsub.f32 %v126, %v130
    %v135 = vsub.f32 %v127, %v131
    %v136 = vadd.f32 %v132, %v96
    %v137 = vadd.f32 %v133, %v105
    %v138 = vadd.f32 %v134, %v114
    %v139 = vadd.f32 %v135, %v123
    %s140 = sld [smem:[#allocation2]]
    %s141 = ssub.f32 %s140, 1.0
    %v142 = vsub.f32 0.0, %v64
    %v143 = vsub.f32 0.0, %v65
    %v144 = vsub.f32 0.0, %v66
    %v145 = vsub.f32 0.0, %v67
    %v146 = vmax.f32 %v142, 0.0
    %v147 = vmax.f32 %v143, 0.0
    %v148 = vmax.f32 %v144, 0.0
    %v149 = vmax.f32 %v145, 0.0
    %v150 = vadd.f32 %v96, %v146
    %v151 = vadd.f32 %v105, %v147
    %v152 = vadd.f32 %v114, %v148
    %v153 = vadd.f32 %v123, %v149
    %v154 = vmul.f32 %v68, %v150
    %v155 = vmul.f32 %v69, %v151
    %v156 = vmul.f32 %v70, %v152
    %v157 = vmul.f32 %v71, %v153
    %v158 = vstv %s141
    %v159 = vmul.f32 %v158, %v154
    %v160 = vmul.f32 %v158, %v155
    %v161 = vmul.f32 %v158, %v156
    %v162 = vmul.f32 %v158, %v157
    %v163 = vadd.f32 %v136, %v159
    %v164 = vadd.f32 %v137, %v160
    %v165 = vadd.f32 %v138, %v161
    %v166 = vadd.f32 %v139, %v162
    %v167 = vld [vmem:[#allocation8] sm:$0xff]
    %v168 = vld [vmem:[#allocation8 + $0x8] sm:$0xff]
    %v169 = vld [vmem:[#allocation8 + $0x10] sm:$0xff]
    %v170 = vld [vmem:[#allocation8 + $0x18] sm:$0xff]
    %v171 = vadd.f32 %v163, 0.0
    %v172 = vadd.f32 %v164, 0.0
    %v173 = vadd.f32 %v165, 0.0
    %v174 = vadd.f32 %v166, 0.0
    %v175 = vadd.f32 %v167, %v171
    %v176 = vadd.f32 %v168, %v172
    %v177 = vadd.f32 %v169, %v173
    %v178 = vadd.f32 %v170, %v174
    %179 = vst [vmem:[#allocation8] sm:$0xff] %v175
    %180 = vst [vmem:[#allocation8 + $0x8] sm:$0xff] %v176
    %181 = vst [vmem:[#allocation8 + $0x10] sm:$0xff] %v177
    %182 = vst [vmem:[#allocation8 + $0x18] sm:$0xff] %v178
    // Predicated region
    $region26: #{tpu_custom_call.1} parent=1 // pred_check
      _
    $region27: #{tpu_custom_call.1} parent=1 // pred_check_branch
      %184 = sbr.rel (0) target = $region29
    $region28: #{tpu_custom_call.1} parent=1 // pred_region
      %s186 = ssub.s32 512, 512
      %187 = vsyncadd [#allocation5], %s186
      %s188 = sshll.u32 [#allocation8], 4
      %s189 = int_to_ptr.vmem [resolvable:$true] %s188
      %194 = dma.vmem_to_hbm [thread:$0]  %s189, 512, %s3, [#allocation5], 128, 128, 8
    $region29: #{tpu_custom_call.1} parent=1 // pred_fallthru
      _
    // Predicated region
    $region30: #{tpu_custom_call.1} parent=1 // pred_check
      _
    $region31: #{tpu_custom_call.1} parent=1 // pred_check_branch
      %196 = sbr.rel (0) target = $region33
    $region32: #{tpu_custom_call.1} parent=1 // pred_region
      %197 = dma.done [#allocation5], 512
    $region33: #{tpu_custom_call.1} parent=1 // pred_fallthru
      _
    %198 = vsyncpa [#allocation4], 1
    %199 = vsyncpa [#allocation7], 1
    %200 = vsyncpa [#allocation5], 1

</llo_original>
